<compile_context>
chip_gen: v7x
topology: tpu7x:2x2x1
jax: 0.10.0
libtpu: 0.0.40
codegen_flags: <defaults>
</compile_context>

<pallas_src>
import functools

import jax
import jax.numpy as jnp
from jax.experimental import pallas as pl
from jax.experimental.pallas import tpu as pltpu

_LANE = 128
_TARGET_BLOCK_BYTES = 4 * 1024 * 1024    # ~4 MiB per VMEM block (v7x-friendly)
_FLOOR_BLOCK_BYTES = 1 * 1024 * 1024     # don't shrink tiles below ~1 MiB
_SINGLE_BLOCK_BYTES = 256 * 1024         # below this: one full-array block
_MIN_BLOCKS = 8                          # pipeline depth / v7x 2-TC sharding
_VMEM_LIMIT_BYTES = 32 * 1024 * 1024


def _cdiv(a: int, b: int) -> int:
    return -(-a // b)


def _clump_kernel(x_ref, o_ref, *, min_v, max_v):
    # Elementwise clamp of the whole VMEM tile (pure VPU min/max).
    x = x_ref[...]
    lo = jnp.asarray(min_v, dtype=x.dtype)
    hi = jnp.asarray(max_v, dtype=x.dtype)
    o_ref[...] = jnp.minimum(jnp.maximum(x, lo), hi)


def _clamp_bounds_to_dtype(min_v, max_v, dtype):
    """Keep bounds inside the dtype's representable range (torch.clamp semantics)."""
    dt = jnp.dtype(dtype)
    if jnp.issubdtype(dt, jnp.integer):
        info = jnp.iinfo(dt)
        lo = int(min(max(min_v, info.min), info.max))
        hi = int(min(max(max_v, info.min), info.max))
        return lo, hi
    return min_v, max_v


def _pick_tile_rows(rows: int, row_bytes: int, sublane: int) -> int:
    """Rows per block (multiple of `sublane`), or `rows` itself for tiny inputs."""
    if rows * row_bytes <= _SINGLE_BLOCK_BYTES or rows <= _MIN_BLOCKS * sublane:
        # Small tensor: one full-array block (exempt from the (8,128) rule),
        # no per-grid-step overhead.
        return rows

    def to_rows(nbytes: int) -> int:
        return max(sublane, (nbytes // row_bytes) // sublane * sublane)

    target_rows = to_rows(_TARGET_BLOCK_BYTES)
    floor_rows = min(to_rows(_FLOOR_BLOCK_BYTES), target_rows)
    # Rows per block if we split into _MIN_BLOCKS pipeline steps.
    split_rows = _cdiv(_cdiv(rows, _MIN_BLOCKS), sublane) * sublane

    tm = max(min(target_rows, split_rows), floor_rows)   # ~1 MiB floor
    tm = min(tm, _cdiv(rows, sublane) * sublane)          # never exceed the array

    # Prefer an EVEN grid for a balanced v7x two-TensorCore split, but only if
    # it doesn't shrink the tile far below the mem-bound-roofline plateau.
    grid_m = _cdiv(rows, tm)
    if grid_m > 1 and grid_m % 2 == 1:
        tm_even = _cdiv(_cdiv(rows, grid_m + 1), sublane) * sublane
        if (tm_even >= sublane
                and _cdiv(rows, tm_even) % 2 == 0
                and tm_even * row_bytes >= _FLOOR_BLOCK_BYTES // 2):
            tm = tm_even
    return tm


def clump(x: jnp.ndarray, min_v=-50, max_v=50, *, donate_input: bool = False) -> jnp.ndarray:
    """Clamp `x` to [min_v, max_v] with a Pallas TPU kernel (any shape/dtype)."""
    orig_shape = x.shape
    dtype = x.dtype
    n = int(x.size)
    if n == 0:
        return x

    lo, hi = _clamp_bounds_to_dtype(min_v, max_v, dtype)
    kernel = functools.partial(_clump_kernel, min_v=lo, max_v=hi)

    itemsize = jnp.dtype(dtype).itemsize
    # Sub-32-bit dtypes pack along sublanes: 8 rows (f32/i32), 16 (bf16), 32 (i8).
    sublane = 8 * max(1, 4 // itemsize)
    row_bytes = _LANE * itemsize

    io_aliases = {0: 0} if donate_input else {}
    cparams = pltpu.CompilerParams(
        dimension_semantics=("parallel",),
        vmem_limit_bytes=_VMEM_LIMIT_BYTES,
    )

    if n % _LANE == 0:
        # ---- Aligned path: metadata-only reshape to a lane-dense (rows, 128) slab.
        rows = n // _LANE
        slab = x.reshape(rows, _LANE)
        tm = _pick_tile_rows(rows, row_bytes, sublane)
        grid_m = _cdiv(rows, tm)
        out = pl.pallas_call(
            kernel,
            out_shape=jax.ShapeDtypeStruct((rows, _LANE), dtype),
            grid_spec=pltpu.PrefetchScalarGridSpec(
                num_scalar_prefetch=0,
                grid=(grid_m,),
                in_specs=[pl.BlockSpec((tm, _LANE), lambda i: (i, 0))],
                out_specs=pl.BlockSpec((tm, _LANE), lambda i: (i, 0)),
            ),
            compiler_params=cparams,
            input_output_aliases=io_aliases,
        )(slab)
        return out.reshape(orig_shape)

    # ---- Unaligned path: no padding, no tail-slice.  Run directly on the flat
    # array with 1D blocks (multiple of sublane*128 elements); the ragged last
    # block is boundary-masked by Pallas (DMA only the in-bounds portion),
    # which is safe for an elementwise op.
    flat = x.reshape(-1)
    vrows = _cdiv(n, _LANE)                      # virtual rows, for tile sizing only
    tm = _pick_tile_rows(vrows, row_bytes, sublane)
    block_elems = tm * _LANE                     # always a multiple of 128
    grid_m = _cdiv(n, block_elems)
    out = pl.pallas_call(
        kernel,
        out_shape=jax.ShapeDtypeStruct((n,), dtype),
        grid_spec=pltpu.PrefetchScalarGridSpec(
            num_scalar_prefetch=0,
            grid=(grid_m,),
            in_specs=[pl.BlockSpec((block_elems,), lambda i: (i,))],
            out_specs=pl.BlockSpec((block_elems,), lambda i: (i,)),
        ),
        compiler_params=cparams,
        input_output_aliases=io_aliases,
    )(flat)
    return out.reshape(orig_shape)


if __name__ == "__main__":
    key = jax.random.PRNGKey(0)
    k1, k2, k3 = jax.random.split(key, 3)

    # Primary example: small NCHW input, scaled so some values exceed [-50, 50].
    x = jax.random.normal(k1, (2, 4, 16, 16), dtype=jnp.float32) * 100.0
    y = jax.block_until_ready(clump(x))
    ref = jnp.clip(x, -50, 50)
    assert y.shape == x.shape and y.dtype == x.dtype
    assert bool(jnp.allclose(y, ref)), "mismatch vs reference clamp (small aligned)"

    # Unaligned total size -> 1D unpadded path with a ragged (masked) last block.
    x2 = jax.random.normal(k2, (2, 3, 50, 70), dtype=jnp.float32) * 100.0
    y2 = jax.block_until_ready(clump(x2))
    assert bool(jnp.allclose(y2, jnp.clip(x2, -50, 50))), "mismatch (unaligned 1D path)"

    # Larger aligned size -> tiled 2D grid path.
    x3 = jax.random.normal(k3, (2, 4, 300, 64), dtype=jnp.float32) * 100.0
    y3 = jax.block_until_ready(clump(x3))
    assert bool(jnp.allclose(y3, jnp.clip(x3, -50, 50))), "mismatch (tiled aligned)"

    # Dtype coverage: bf16 and int32 (bounds are exactly representable).
    xb = (jax.random.normal(k1, (8, 256), dtype=jnp.float32) * 100.0).astype(jnp.bfloat16)
    yb = jax.block_until_ready(clump(xb))
    assert bool(jnp.allclose(yb.astype(jnp.float32),
                             jnp.clip(xb.astype(jnp.float32), -50, 50))), "mismatch (bf16)"

    xi = jax.random.randint(k2, (16, 128), -128, 128, dtype=jnp.int32)
    yi = jax.block_until_ready(clump(xi))
    assert bool(jnp.array_equal(yi, jnp.clip(xi, -50, 50))), "mismatch (int32)"

    print("KERNEL_OK")
</pallas_src>

<mosaic_0001>
module attributes {stable_mosaic.version = 11 : i64} {
  func.func @_clump_kernel(%arg0: i32, %arg1: memref<16x128xf32, #tpu.memory_space<vmem>>, %arg2: memref<16x128xf32, #tpu.memory_space<vmem>>) attributes {dimension_semantics = [#tpu.dimension_semantics<parallel>], iteration_bounds = array<i64: 1>, scalar_prefetch = 0 : i64, scratch_operands = 0 : i64, tpu.core_type = #tpu.core_type<tc>, window_params = [{transform_indices = @transform_0, window_bounds = array<i64: 16, 128>}, {transform_indices = @transform_1, window_bounds = array<i64: 16, 128>}]} {
    %c0 = arith.constant 0 : index
    %c0_0 = arith.constant 0 : index
    %0 = vector.load %arg1[%c0, %c0_0] : memref<16x128xf32, #tpu.memory_space<vmem>>, vector<16x128xf32>
    %cst = arith.constant -5.000000e+01 : f32
    %1 = vector.broadcast %cst : f32 to vector<16x128xf32>
    %2 = arith.maximumf %0, %1 : vector<16x128xf32>
    %cst_1 = arith.constant 5.000000e+01 : f32
    %3 = vector.broadcast %cst_1 : f32 to vector<16x128xf32>
    %4 = arith.minimumf %2, %3 : vector<16x128xf32>
    %c0_2 = arith.constant 0 : index
    %c0_3 = arith.constant 0 : index
    %5 = vector.load %arg2[%c0_2, %c0_3] : memref<16x128xf32, #tpu.memory_space<vmem>>, vector<16x128xf32>
    tpu.vector_store %arg2[%c0_2, %c0_3], %4 {strides = array<i32>} : memref<16x128xf32, #tpu.memory_space<vmem>>, vector<16x128xf32>,
    return
  }
  func.func @transform_0(%arg0: i32) -> (i32, i32) {
    %c0_i32 = arith.constant 0 : i32
    %c0_i32_0 = arith.constant 0 : i32
    return %arg0, %c0_i32 : i32, i32
  }
  func.func @transform_1(%arg0: i32) -> (i32, i32) {
    %c0_i32 = arith.constant 0 : i32
    %c0_i32_0 = arith.constant 0 : i32
    return %arg0, %c0_i32 : i32, i32
  }
}

</mosaic_0001>

<llo_original>
// kernel: tpu_custom_call.1
$region0: #{tpu_custom_call.1}
  #allocation0 [shape = 'u32[]', space=smem, size = 0x4, offset = 0x4, fixed_abs, tag = 'smem constant byte address 0x4 - core index']
  #allocation1 [shape = 'u32[144,128]{1,0:T(1,128)}', space=vmem, size = 0x12000, scoped, tag = 'internal scratch']
  %s0 = inlined_call_operand.hbm [shape: f32[16,128], index: 0, kind: input, shape index: {}]
  %s1 = inlined_call_operand.hbm [shape: f32[16,128], index: 1, kind: output, shape index: {}]
  %s2 = sld [smem:[#allocation0]]
  $region18: #{tpu_custom_call.1} parent=0
    _
  %s4 = ssub.s32 1, %s2
  %s5 = scalar_select 0, %s4, %s2
  $region1: #{tpu_custom_call.1} parent=0
    #allocation2 [shape = 'u8[8192]{0}', space=vmem, size = 0x2000, scoped, tag = 'input window, operand 0, single buffered']
    #allocation3 [shape = 's32[1]{0}', space=sflag, size = 0x4, scoped, tag = 'scoped memory for tpu_custom_call.1']
    #allocation4 [shape = 's32[1]{0}', space=sflag, size = 0x4, scoped, tag = 'scoped memory for tpu_custom_call.1']
    #allocation5 [shape = 'u8[8192]{0}', space=vmem, size = 0x2000, scoped, tag = 'output window, operand 0, single buffered']
    %6 = vsyncpa [#allocation3], 0
    %7 = vsyncpa [#allocation4], 0
    // Predicated region
    $region2: #{tpu_custom_call.1} parent=1 // pred_check
      _
    $region3: #{tpu_custom_call.1} parent=1 // pred_check_branch
      %9 = sbr.rel (0) target = $region5
    $region4: #{tpu_custom_call.1} parent=1 // pred_region
      %s11 = ssub.s32 256, 256
      %12 = vsyncadd [#allocation3], %s11
      %s13 = sshll.u32 [#allocation2], 4
      %s14 = int_to_ptr.vmem [resolvable:$true] %s13
      %19 = dma.hbm_to_vmem [thread:$0]  %s0, 256, %s14, [#allocation3], 128, 128, 8
    $region5: #{tpu_custom_call.1} parent=1 // pred_fallthru
      _
    // Predicated region
    $region6: #{tpu_custom_call.1} parent=1 // pred_check
      _
    $region7: #{tpu_custom_call.1} parent=1 // pred_check_branch
      %21 = sbr.rel (0) target = $region9
    $region8: #{tpu_custom_call.1} parent=1 // pred_region
      %22 = dma.done [#allocation3], 256
    $region9: #{tpu_custom_call.1} parent=1 // pred_fallthru
      _
    %v23 = vld [vmem:[#allocation2] sm:$0xff]
    %v24 = vld [vmem:[#allocation2 + $0x8] sm:$0xff]
    %v25 = vmax.f32 %v23, -50.0
    %v26 = vmax.f32 %v24, -50.0
    %v27 = vmin.f32 %v25, 50.0
    %v28 = vmin.f32 %v26, 50.0
    %29 = vst [vmem:[#allocation5] sm:$0xff] %v27
    %30 = vst [vmem:[#allocation5 + $0x8] sm:$0xff] %v28
    // Predicated region
    $region10: #{tpu_custom_call.1} parent=1 // pred_check
      _
    $region11: #{tpu_custom_call.1} parent=1 // pred_check_branch
      %32 = sbr.rel (0) target = $region13
    $region12: #{tpu_custom_call.1} parent=1 // pred_region
      %s34 = ssub.s32 256, 256
      %35 = vsyncadd [#allocation4], %s34
      %s36 = sshll.u32 [#allocation5], 4
      %s37 = int_to_ptr.vmem [resolvable:$true] %s36
      %42 = dma.vmem_to_hbm [thread:$0]  %s37, 256, %s1, [#allocation4], 128, 128, 8
    $region13: #{tpu_custom_call.1} parent=1 // pred_fallthru
      _
    // Predicated region
    $region14: #{tpu_custom_call.1} parent=1 // pred_check
      _
    $region15: #{tpu_custom_call.1} parent=1 // pred_check_branch
      %44 = sbr.rel (0) target = $region17
    $region16: #{tpu_custom_call.1} parent=1 // pred_region
      %45 = dma.done [#allocation4], 256
    $region17: #{tpu_custom_call.1} parent=1 // pred_fallthru
      _
    %46 = vsyncpa [#allocation3], 1
    %47 = vsyncpa [#allocation4], 1

</llo_original>
